<compile_context>
chip_gen: v5e
topology: v5e:2x2
jax: 0.10.0
libtpu: 0.0.40
codegen_flags: <defaults>
</compile_context>

<pallas_src>
import functools

import jax
import jax.numpy as jnp
from jax.experimental import pallas as pl
from jax.experimental.pallas import tpu as pltpu


def _round_up(x, m):
    return ((x + m - 1) // m) * m


def _critic_kernel(sa_ref, w1_ref, b1_ref, w2_ref, b2_ref, w3_ref, b3_ref, q_ref):
    # fc1 (single fused matmul over the padded concat dim) + bias + relu (f32)
    h1 = jnp.dot(sa_ref[...], w1_ref[...], preferred_element_type=jnp.float32)
    h1 = jnp.maximum(h1 + b1_ref[...], 0.0)

    # fc2 + bias + relu  (operands in compute dtype, f32 accumulation)
    h2 = jnp.dot(h1.astype(w2_ref.dtype), w2_ref[...],
                 preferred_element_type=jnp.float32)
    h2 = jnp.maximum(h2 + b2_ref[...], 0.0)

    # fc3: (tb, f2) x (f2, 1) MXU dot -> tiny (tb, 1) output block.
    q = jnp.dot(h2.astype(w3_ref.dtype), w3_ref[...],
                preferred_element_type=jnp.float32)
    q_ref[...] = (q + b3_ref[...]).astype(q_ref.dtype)


def prepare_params(params, *, compute_dtype=jnp.bfloat16):
    """One-time parameter prep (hoisted out of the hot path).

    params = (w1[in, f1], b1, w2[f1, f2], b2, w3[f2, 1], b3)  (f32, [in,out]).
    Pads the fc1 contraction dim with zero rows (exact math), reshapes biases
    to lane-dense rows, and casts matmul operands to `compute_dtype`
    (None -> keep f32).
    """
    w1, b1, w2, b2, w3, b3 = params
    cd = w1.dtype if compute_dtype is None else compute_dtype

    k = w1.shape[0]
    pack = 16 if cd == jnp.bfloat16 else 8          # bf16 packs 2 rows / sublane
    k_p = _round_up(max(k, 1), pack)

    w1p = jnp.pad(w1, ((0, k_p - k), (0, 0))).astype(cd)
    w2c = w2.astype(cd)
    w3c = jnp.reshape(w3, (w3.shape[0], 1)).astype(cd)
    b1r = jnp.reshape(b1, (1, -1)).astype(jnp.float32)
    b2r = jnp.reshape(b2, (1, -1)).astype(jnp.float32)
    b3r = jnp.reshape(b3, (1, 1)).astype(jnp.float32)
    return (w1p, b1r, w2c, b2r, w3c, b3r)


def critic_forward(state, action, prepped, *, tile_b=1024):
    """state: [B, input_dims], action: [B, n_actions] -> Q: [B, 1]."""
    w1p, b1r, w2c, b2r, w3c, b3r = prepped
    cd = w1p.dtype
    k_p, f1 = w1p.shape
    f2 = w2c.shape[1]

    B = state.shape[0]
    k = state.shape[1] + action.shape[1]

    # Batch tile: multiple of 128, capped at tile_b.
    tb = min(tile_b, _round_up(B, 128))
    # v7x megacore: if the batch is big enough, make sure there are >= 2 grid
    # steps so the "parallel" axis can shard across both TensorCores.
    if B >= 256 and _round_up(B, tb) == tb:
        tb = _round_up(pl.cdiv(B, 2), 128)
    b_p = _round_up(B, tb)
    nb = b_p // tb

    # Per-call activation prep: trivial (B, ds+da) concat + pad + cast.
    sa = jnp.concatenate([state, action], axis=1)
    sa = jnp.pad(sa, ((0, b_p - B), (0, k_p - k))).astype(cd)

    const = lambda i: (0, 0)   # weights/biases: same block every step -> resident

    q = pl.pallas_call(
        _critic_kernel,
        out_shape=jax.ShapeDtypeStruct((b_p, 1), jnp.float32),
        grid=(nb,),
        in_specs=[
            pl.BlockSpec((tb, k_p), lambda i: (i, 0)),   # state|action tile
            pl.BlockSpec((k_p, f1), const),              # w1 (padded concat dim)
            pl.BlockSpec((1, f1), const),                # b1
            pl.BlockSpec((f1, f2), const),               # w2
            pl.BlockSpec((1, f2), const),                # b2
            pl.BlockSpec((f2, 1), const),                # w3 column
            pl.BlockSpec((1, 1), const),                 # b3
        ],
        out_specs=pl.BlockSpec((tb, 1), lambda i: (i, 0)),
        compiler_params=pltpu.CompilerParams(
            dimension_semantics=("parallel",)),
    )(sa, w1p, b1r, w2c, b2r, w3c, b3r)

    return q[:B]


def init_params(key, input_dims, n_actions, fc1_dims=256, fc2_dims=256):
    """Deterministic init mimicking nn.Linear default (U[-1/sqrt(fan_in), +])."""
    def linear(key, fan_in, fan_out):
        kw, kb = jax.random.split(key)
        bound = 1.0 / jnp.sqrt(fan_in)
        # stored as [in, out] (transposed vs. PyTorch's [out, in])
        w = jax.random.uniform(kw, (fan_in, fan_out), jnp.float32, -bound, bound)
        b = jax.random.uniform(kb, (1, fan_out), jnp.float32, -bound, bound)
        return w, b

    k1, k2, k3 = jax.random.split(key, 3)
    w1, b1 = linear(k1, input_dims + n_actions, fc1_dims)
    w2, b2 = linear(k2, fc1_dims, fc2_dims)
    w3, b3 = linear(k3, fc2_dims, 1)
    return (w1, b1, w2, b2, w3, b3)


if __name__ == "__main__":
    key = jax.random.PRNGKey(0)
    kp, ks, ka = jax.random.split(key, 3)

    batch = 8
    input_dims = 16
    n_actions = 4

    params = init_params(kp, input_dims, n_actions)
    state = jax.random.normal(ks, (batch, input_dims), jnp.float32)
    action = jax.random.normal(ka, (batch, n_actions), jnp.float32)

    # Pure-JAX reference (same math as the PyTorch forward, f32).
    w1, b1, w2, b2, w3, b3 = params
    sa = jnp.concatenate([state, action], axis=1)
    h1 = jnp.maximum(sa @ w1 + b1, 0.0)
    h2 = jnp.maximum(h1 @ w2 + b2, 0.0)
    q_ref = h2 @ w3 + b3

    # f32 compute path: tight check.
    prepped_f32 = prepare_params(params, compute_dtype=None)
    q_f32 = critic_forward(state, action, prepped_f32)
    jax.block_until_ready(q_f32)
    assert q_f32.shape == (batch, 1)
    assert jnp.allclose(q_f32, q_ref, atol=1e-3, rtol=1e-3), (
        f"f32 max abs err = {float(jnp.max(jnp.abs(q_f32 - q_ref)))}")

    # Default bf16-operand path (f32 accumulation): looser tolerance by design.
    prepped_bf16 = prepare_params(params)  # compute_dtype=bfloat16 (default)
    q_bf16 = critic_forward(state, action, prepped_bf16)
    jax.block_until_ready(q_bf16)
    assert q_bf16.shape == (batch, 1)
    assert jnp.allclose(q_bf16, q_ref, atol=5e-2, rtol=5e-2), (
        f"bf16 max abs err = {float(jnp.max(jnp.abs(q_bf16 - q_ref)))}")

    print("KERNEL_OK")
</pallas_src>

<mosaic_0001>
module attributes {stable_mosaic.version = 11 : i64} {
  func.func @_critic_kernel(%arg0: i32, %arg1: memref<128x24xf32, #tpu.memory_space<vmem>>, %arg2: memref<24x256xf32, #tpu.memory_space<vmem>>, %arg3: memref<1x256xf32, #tpu.memory_space<vmem>>, %arg4: memref<256x256xf32, #tpu.memory_space<vmem>>, %arg5: memref<1x256xf32, #tpu.memory_space<vmem>>, %arg6: memref<256x1xf32, #tpu.memory_space<vmem>>, %arg7: memref<1x1xf32, #tpu.memory_space<vmem>>, %arg8: memref<128x1xf32, #tpu.memory_space<vmem>>) attributes {dimension_semantics = [#tpu.dimension_semantics<parallel>], iteration_bounds = array<i64: 1>, scalar_prefetch = 0 : i64, scratch_operands = 0 : i64, tpu.core_type = #tpu.core_type<tc>, window_params = [{transform_indices = @transform_0, window_bounds = array<i64: 128, 24>}, {pipeline_mode = #tpu.pipeline_mode<synchronous>, transform_indices = @transform_1, window_bounds = array<i64: 24, 256>}, {pipeline_mode = #tpu.pipeline_mode<synchronous>, transform_indices = @transform_2, window_bounds = array<i64: 1, 256>}, {pipeline_mode = #tpu.pipeline_mode<synchronous>, transform_indices = @transform_3, window_bounds = array<i64: 256, 256>}, {pipeline_mode = #tpu.pipeline_mode<synchronous>, transform_indices = @transform_4, window_bounds = array<i64: 1, 256>}, {pipeline_mode = #tpu.pipeline_mode<synchronous>, transform_indices = @transform_5, window_bounds = array<i64: 256, 1>}, {pipeline_mode = #tpu.pipeline_mode<synchronous>, transform_indices = @transform_6, window_bounds = array<i64: 1, 1>}, {transform_indices = @transform_7, window_bounds = array<i64: 128, 1>}]} {
    %c0 = arith.constant 0 : index
    %c0_0 = arith.constant 0 : index
    %0 = vector.load %arg1[%c0, %c0_0] : memref<128x24xf32, #tpu.memory_space<vmem>>, vector<128x24xf32>
    %c0_1 = arith.constant 0 : index
    %c0_2 = arith.constant 0 : index
    %1 = vector.load %arg2[%c0_1, %c0_2] : memref<24x256xf32, #tpu.memory_space<vmem>>, vector<24x256xf32>
    %cst = arith.constant dense<0.000000e+00> : vector<128x256xf32>
    %2 = tpu.matmul %0, %1, %cst {dimension_numbers = #tpu.dot_dimension_numbers<[1], [0], [0], [1], [0, 0, 1, 1], [], []>} : vector<128x24xf32>, vector<24x256xf32>, vector<128x256xf32> -> vector<128x256xf32>
    %c0_3 = arith.constant 0 : index
    %c0_4 = arith.constant 0 : index
    %3 = vector.load %arg3[%c0_3, %c0_4] : memref<1x256xf32, #tpu.memory_space<vmem>>, vector<1x256xf32>
    %4 = vector.broadcast %3 : vector<1x256xf32> to vector<128x256xf32>
    %5 = arith.addf %2, %4 : vector<128x256xf32>
    %cst_5 = arith.constant 0.000000e+00 : f32
    %6 = vector.broadcast %cst_5 : f32 to vector<128x256xf32>
    %7 = arith.maximumf %5, %6 : vector<128x256xf32>
    %c0_6 = arith.constant 0 : index
    %c0_7 = arith.constant 0 : index
    %8 = vector.load %arg4[%c0_6, %c0_7] : memref<256x256xf32, #tpu.memory_space<vmem>>, vector<256x256xf32>
    %cst_8 = arith.constant dense<0.000000e+00> : vector<128x256xf32>
    %9 = tpu.matmul %7, %8, %cst_8 {dimension_numbers = #tpu.dot_dimension_numbers<[1], [0], [0], [1], [0, 0, 1, 1], [], []>} : vector<128x256xf32>, vector<256x256xf32>, vector<128x256xf32> -> vector<128x256xf32>
    %c0_9 = arith.constant 0 : index
    %c0_10 = arith.constant 0 : index
    %10 = vector.load %arg5[%c0_9, %c0_10] : memref<1x256xf32, #tpu.memory_space<vmem>>, vector<1x256xf32>
    %11 = vector.broadcast %10 : vector<1x256xf32> to vector<128x256xf32>
    %12 = arith.addf %9, %11 : vector<128x256xf32>
    %cst_11 = arith.constant 0.000000e+00 : f32
    %13 = vector.broadcast %cst_11 : f32 to vector<128x256xf32>
    %14 = arith.maximumf %12, %13 : vector<128x256xf32>
    %c0_12 = arith.constant 0 : index
    %c0_13 = arith.constant 0 : index
    %15 = vector.load %arg6[%c0_12, %c0_13] : memref<256x1xf32, #tpu.memory_space<vmem>>, vector<256x1xf32>
    %cst_14 = arith.constant dense<0.000000e+00> : vector<128x1xf32>
    %16 = tpu.matmul %14, %15, %cst_14 {dimension_numbers = #tpu.dot_dimension_numbers<[1], [0], [0], [1], [0, 0, 1, 1], [], []>} : vector<128x256xf32>, vector<256x1xf32>, vector<128x1xf32> -> vector<128x1xf32>
    %c0_15 = arith.constant 0 : index
    %c0_16 = arith.constant 0 : index
    %17 = vector.load %arg7[%c0_15, %c0_16] : memref<1x1xf32, #tpu.memory_space<vmem>>, vector<1x1xf32>
    %18 = vector.broadcast %17 : vector<1x1xf32> to vector<128x1xf32>
    %19 = arith.addf %16, %18 : vector<128x1xf32>
    %c0_17 = arith.constant 0 : index
    %c0_18 = arith.constant 0 : index
    %20 = vector.load %arg8[%c0_17, %c0_18] : memref<128x1xf32, #tpu.memory_space<vmem>>, vector<128x1xf32>
    tpu.vector_store %arg8[%c0_17, %c0_18], %19 {strides = array<i32>} : memref<128x1xf32, #tpu.memory_space<vmem>>, vector<128x1xf32>,
    return
  }
  func.func @transform_0(%arg0: i32) -> (i32, i32) {
    %c0_i32 = arith.constant 0 : i32
    %c0_i32_0 = arith.constant 0 : i32
    return %arg0, %c0_i32 : i32, i32
  }
  func.func @transform_1(%arg0: i32) -> (i32, i32) {
    %c0_i32 = arith.constant 0 : i32
    %c0_i32_0 = arith.constant 0 : i32
    %c0_i32_1 = arith.constant 0 : i32
    return %c0_i32, %c0_i32_0 : i32, i32
  }
  func.func @transform_2(%arg0: i32) -> (i32, i32) {
    %c0_i32 = arith.constant 0 : i32
    %c0_i32_0 = arith.constant 0 : i32
    %c0_i32_1 = arith.constant 0 : i32
    return %c0_i32, %c0_i32_0 : i32, i32
  }
  func.func @transform_3(%arg0: i32) -> (i32, i32) {
    %c0_i32 = arith.constant 0 : i32
    %c0_i32_0 = arith.constant 0 : i32
    %c0_i32_1 = arith.constant 0 : i32
    return %c0_i32, %c0_i32_0 : i32, i32
  }
  func.func @transform_4(%arg0: i32) -> (i32, i32) {
    %c0_i32 = arith.constant 0 : i32
    %c0_i32_0 = arith.constant 0 : i32
    %c0_i32_1 = arith.constant 0 : i32
    return %c0_i32, %c0_i32_0 : i32, i32
  }
  func.func @transform_5(%arg0: i32) -> (i32, i32) {
    %c0_i32 = arith.constant 0 : i32
    %c0_i32_0 = arith.constant 0 : i32
    %c0_i32_1 = arith.constant 0 : i32
    return %c0_i32, %c0_i32_0 : i32, i32
  }
  func.func @transform_6(%arg0: i32) -> (i32, i32) {
    %c0_i32 = arith.constant 0 : i32
    %c0_i32_0 = arith.constant 0 : i32
    %c0_i32_1 = arith.constant 0 : i32
    return %c0_i32, %c0_i32_0 : i32, i32
  }
  func.func @transform_7(%arg0: i32) -> (i32, i32) {
    %c0_i32 = arith.constant 0 : i32
    %c0_i32_0 = arith.constant 0 : i32
    return %arg0, %c0_i32 : i32, i32
  }
}

</mosaic_0001>

<llo_original>
// kernel: tpu_custom_call.1
$region0: #{tpu_custom_call.1}
  #allocation0 [shape = 'u32[]', space=smem, size = 0x4, offset = 0x4, fixed_abs, tag = 'smem constant byte address 0x4 - core index']
  #allocation1 [shape = 'u32[72,128]{1,0:T(1,128)}', space=vmem, size = 0x9000, scoped, tag = 'internal scratch']
  #allocation2 [shape = 'f32[1,1]{1,0:T(1,128)S(1)}', space=vmem, size = 0x200, scoped, tag = 'scoped memory for tpu_custom_call.1']
  %s0 = inlined_call_operand.vmem [shape: f32[128,24], index: 0, kind: input, shape index: {}]
  %s1 = inlined_call_operand.vmem [shape: f32[24,256], index: 1, kind: input, shape index: {}]
  %s2 = inlined_call_operand.vmem [shape: f32[1,256], index: 2, kind: input, shape index: {}]
  %s3 = inlined_call_operand.hbm [shape: f32[256,256], index: 3, kind: input, shape index: {}]
  %s4 = inlined_call_operand.vmem [shape: f32[1,256], index: 4, kind: input, shape index: {}]
  %s5 = inlined_call_operand.vmem [shape: f32[256,1], index: 5, kind: input, shape index: {}]
  %s6 = inlined_call_operand.<no memory space> [shape: f32[1,1], index: 6, kind: input, shape index: {}]
  %s7 = inlined_call_operand.vmem [shape: f32[128,1], index: 7, kind: output, shape index: {}]
  %s8 = sld [smem:[#allocation0]]
  $region42: #{tpu_custom_call.1} parent=0
    _
  %s10 = ssub.s32 1, %s8
  %s11 = scalar_select 0, %s10, %s8
  %v12 = vstv %s6
  %13 = vst [vmem:[#allocation2] sm:$0x1] %v12
  $region1: #{tpu_custom_call.1} parent=0
    #allocation3 [shape = 'u8[262144]{0}', space=vmem, size = 0x40000, scoped, tag = 'input window, operand 3, single buffered']
    #allocation4 [shape = 's32[1]{0}', space=sflag, size = 0x4, scoped, tag = 'scoped memory for tpu_custom_call.1']
    %14 = vsyncpa [#allocation4], 0
    // Predicated region
    $region2: #{tpu_custom_call.1} parent=1 // pred_check
      _
    $region3: #{tpu_custom_call.1} parent=1 // pred_check_branch
      %16 = sbr.rel (0) target = $region5
    $region4: #{tpu_custom_call.1} parent=1 // pred_region
      _
    $region5: #{tpu_custom_call.1} parent=1 // pred_fallthru
      _
    // Predicated region
    $region6: #{tpu_custom_call.1} parent=1 // pred_check
      _
    $region7: #{tpu_custom_call.1} parent=1 // pred_check_branch
      %18 = sbr.rel (0) target = $region9
    $region8: #{tpu_custom_call.1} parent=1 // pred_region
      _
    $region9: #{tpu_custom_call.1} parent=1 // pred_fallthru
      _
    // Predicated region
    $region10: #{tpu_custom_call.1} parent=1 // pred_check
      _
    $region11: #{tpu_custom_call.1} parent=1 // pred_check_branch
      %20 = sbr.rel (0) target = $region13
    $region12: #{tpu_custom_call.1} parent=1 // pred_region
      _
    $region13: #{tpu_custom_call.1} parent=1 // pred_fallthru
      _
    // Predicated region
    $region14: #{tpu_custom_call.1} parent=1 // pred_check
      _
    $region15: #{tpu_custom_call.1} parent=1 // pred_check_branch
      %22 = sbr.rel (0) target = $region17
    $region16: #{tpu_custom_call.1} parent=1 // pred_region
      %24 = vsyncadd [#allocation4], 0
      %s25 = sshll.u32 %s3, 4
      %s26 = int_to_ptr.hbm [resolvable:$true] %s25
      %s27 = sshll.u32 [#allocation3], 4
      %s28 = int_to_ptr.vmem [resolvable:$true] %s27
      %33 = dma.hbm_to_vmem [thread:$0]  %s26, 8192, %s28, [#allocation4], 256, 256, 16
    $region17: #{tpu_custom_call.1} parent=1 // pred_fallthru
      _
    // Predicated region
    $region18: #{tpu_custom_call.1} parent=1 // pred_check
      _
    $region19: #{tpu_custom_call.1} parent=1 // pred_check_branch
      %35 = sbr.rel (0) target = $region21
    $region20: #{tpu_custom_call.1} parent=1 // pred_region
      _
    $region21: #{tpu_custom_call.1} parent=1 // pred_fallthru
      _
    // Predicated region
    $region22: #{tpu_custom_call.1} parent=1 // pred_check
      _
    $region23: #{tpu_custom_call.1} parent=1 // pred_check_branch
      %37 = sbr.rel (0) target = $region25
    $region24: #{tpu_custom_call.1} parent=1 // pred_region
      _
    $region25: #{tpu_custom_call.1} parent=1 // pred_fallthru
      _
    // Predicated region
    $region26: #{tpu_custom_call.1} parent=1 // pred_check
      _
    $region27: #{tpu_custom_call.1} parent=1 // pred_check_branch
      %39 = sbr.rel (0) target = $region29
    $region28: #{tpu_custom_call.1} parent=1 // pred_region
      _
    $region29: #{tpu_custom_call.1} parent=1 // pred_fallthru
      _
    // Predicated region
    $region30: #{tpu_custom_call.1} parent=1 // pred_check
      _
    $region31: #{tpu_custom_call.1} parent=1 // pred_check_branch
      %41 = sbr.rel (0) target = $region33
    $region32: #{tpu_custom_call.1} parent=1 // pred_region
      %43 = dma.done [#allocation4], 8192
    $region33: #{tpu_custom_call.1} parent=1 // pred_fallthru
      _
    %v44 = vld [vmem:[%s0] sm:$0xff]
    %v45 = vld [vmem:[%s0 + $0x8] sm:$0xff]
    %v46 = vld [vmem:[%s0 + $0x10] sm:$0xff]
    %v47 = vld [vmem:[%s0 + $0x18] sm:$0xff]
    %v48 = vld [vmem:[%s0 + $0x20] sm:$0xff]
    %v49 = vld [vmem:[%s0 + $0x28] sm:$0xff]
    %v50 = vld [vmem:[%s0 + $0x30] sm:$0xff]
    %v51 = vld [vmem:[%s0 + $0x38] sm:$0xff]
    %v52 = vld [vmem:[%s0 + $0x40] sm:$0xff]
    %v53 = vld [vmem:[%s0 + $0x48] sm:$0xff]
    %v54 = vld [vmem:[%s0 + $0x50] sm:$0xff]
    %v55 = vld [vmem:[%s0 + $0x58] sm:$0xff]
    %v56 = vld [vmem:[%s0 + $0x60] sm:$0xff]
    %v57 = vld [vmem:[%s0 + $0x68] sm:$0xff]
    %v58 = vld [vmem:[%s0 + $0x70] sm:$0xff]
    %v59 = vld [vmem:[%s0 + $0x78] sm:$0xff]
    %v60 = vld [vmem:[%s1] sm:$0xff]
    %v61 = vld [vmem:[%s1 + $0x8] sm:$0xff]
    %v62 = vld [vmem:[%s1 + $0x10] sm:$0xff]
    %v63 = vld [vmem:[%s1 + $0x18] sm:$0xff]
    %v64 = vld [vmem:[%s1 + $0x20] sm:$0xff]
    %v65 = vld [vmem:[%s1 + $0x28] sm:$0xff]
    %v66 = vld [vmem:[%s2] sm:$0x3]
    %v68 = vperm.slane %v66, 0
    %v69 = vperm.slane %v66, 1
    %vm72 = vcmask 195584
    %v74 = vsel %vm72, %v44, 0
    %v77 = vsel %vm72, %v45, 0
    %v80 = vsel %vm72, %v46, 0
    %v83 = vsel %vm72, %v47, 0
    %v86 = vsel %vm72, %v48, 0
    %v89 = vsel %vm72, %v49, 0
    %v92 = vsel %vm72, %v50, 0
    %v95 = vsel %vm72, %v51, 0
    %v98 = vsel %vm72, %v52, 0
    %v101 = vsel %vm72, %v53, 0
    %v104 = vsel %vm72, %v54, 0
    %v107 = vsel %vm72, %v55, 0
    %v110 = vsel %vm72, %v56, 0
    %v113 = vsel %vm72, %v57, 0
    %v116 = vsel %vm72, %v58, 0
    %v119 = vsel %vm72, %v59, 0
    %121 = vmatpush.msra.mxu0 0.0
    %122 = vmatpush.msra.mxu0 0.0
    %123 = vmatpush.msra.mxu0 0.0
    %124 = vmatpush.msra.mxu0 0.0
    %125 = vmatpush.msra.mxu0 0.0
    %126 = vmatpush.msra.mxu0 0.0
    %127 = vmatpush.msra.mxu0 0.0
    %128 = vmatpush.msra.mxu0 0.0
    %129 = vmatpush.msra.mxu0 0.0
    %130 = vmatpush.msra.mxu0 0.0
    %131 = vmatpush.msra.mxu0 0.0
    %132 = vmatpush.msra.mxu0 0.0
    %133 = vmatpush.msra.mxu0 0.0
    %134 = vmatpush.msra.mxu0 %v64
    %135 = vmatpush.msra.mxu0 %v62
    %136 = vmatpush.msra.mxu0 %v60
    %137 = vmatmul.f32.gmra.mxu0 %v74
    %v138 = vpop.f32.mrf.mxu0
    %v139 = vadd.f32 %v68, %v138
    %140 = vmatmul.f32.gmra.mxu0 %v77
    %v141 = vpop.f32.mrf.mxu0
    %v142 = vadd.f32 %v68, %v141
    %143 = vmatmul.f32.gmra.mxu0 %v80
    %v144 = vpop.f32.mrf.mxu0
    %v145 = vadd.f32 %v68, %v144
    %146 = vmatmul.f32.gmra.mxu0 %v83
    %v147 = vpop.f32.mrf.mxu0
    %v148 = vadd.f32 %v68, %v147
    %149 = vmatmul.f32.gmra.mxu0 %v86
    %v150 = vpop.f32.mrf.mxu0
    %v151 = vadd.f32 %v68, %v150
    %152 = vmatmul.f32.gmra.mxu0 %v89
    %v153 = vpop.f32.mrf.mxu0
    %v154 = vadd.f32 %v68, %v153
    %155 = vmatmul.f32.gmra.mxu0 %v92
    %v156 = vpop.f32.mrf.mxu0
    %v157 = vadd.f32 %v68, %v156
    %158 = vmatmul.f32.gmra.mxu0 %v95
    %v159 = vpop.f32.mrf.mxu0
    %v160 = vadd.f32 %v68, %v159
    %161 = vmatmul.f32.gmra.mxu0 %v98
    %v162 = vpop.f32.mrf.mxu0
    %v163 = vadd.f32 %v68, %v162
    %164 = vmatmul.f32.gmra.mxu0 %v101
    %v165 = vpop.f32.mrf.mxu0
    %v166 = vadd.f32 %v68, %v165
    %167 = vmatmul.f32.gmra.mxu0 %v104
    %v168 = vpop.f32.mrf.mxu0
    %v169 = vadd.f32 %v68, %v168
    %170 = vmatmul.f32.gmra.mxu0 %v107
    %v171 = vpop.f32.mrf.mxu0
    %v172 = vadd.f32 %v68, %v171
    %173 = vmatmul.f32.gmra.mxu0 %v110
    %v174 = vpop.f32.mrf.mxu0
    %v175 = vadd.f32 %v68, %v174
    %176 = vmatmul.f32.gmra.mxu0 %v113
    %v177 = vpop.f32.mrf.mxu0
    %v178 = vadd.f32 %v68, %v177
    %179 = vmatmul.f32.gmra.mxu0 %v116
    %v180 = vpop.f32.mrf.mxu0
    %v181 = vadd.f32 %v68, %v180
    %182 = vmatmul.f32.gmra.mxu0 %v119
    %v183 = vpop.f32.mrf.mxu0
    %v184 = vadd.f32 %v68, %v183
    %185 = vdwg.mxu0
    %186 = vmatpush.msra.mxu0 0.0
    %187 = vmatpush.msra.mxu0 0.0
    %188 = vmatpush.msra.mxu0 0.0
    %189 = vmatpush.msra.mxu0 0.0
    %190 = vmatpush.msra.mxu0 0.0
    %191 = vmatpush.msra.mxu0 0.0
    %192 = vmatpush.msra.mxu0 0.0
    %193 = vmatpush.msra.mxu0 0.0
    %194 = vmatpush.msra.mxu0 0.0
    %195 = vmatpush.msra.mxu0 0.0
    %196 = vmatpush.msra.mxu0 0.0
    %197 = vmatpush.msra.mxu0 0.0
    %198 = vmatpush.msra.mxu0 0.0
    %199 = vmatpush.msra.mxu0 %v65
    %200 = vmatpush.msra.mxu0 %v63
    %201 = vmatpush.msra.mxu0 %v61
    %202 = vmatmul.f32.gmra.mxu0 %v74
    %v203 = vpop.f32.mrf.mxu0
    %v204 = vadd.f32 %v69, %v203
    %205 = vmatmul.f32.gmra.mxu0 %v77
    %v206 = vpop.f32.mrf.mxu0
    %v207 = vadd.f32 %v69, %v206
    %208 = vmatmul.f32.gmra.mxu0 %v80
    %v209 = vpop.f32.mrf.mxu0
    %v210 = vadd.f32 %v69, %v209
    %211 = vmatmul.f32.gmra.mxu0 %v83
    %v212 = vpop.f32.mrf.mxu0
    %v213 = vadd.f32 %v69, %v212
    %214 = vmatmul.f32.gmra.mxu0 %v86
    %v215 = vpop.f32.mrf.mxu0
    %v216 = vadd.f32 %v69, %v215
    %217 = vmatmul.f32.gmra.mxu0 %v89
    %v218 = vpop.f32.mrf.mxu0
    %v219 = vadd.f32 %v69, %v218
    %220 = vmatmul.f32.gmra.mxu0 %v92
    %v221 = vpop.f32.mrf.mxu0
    %v222 = vadd.f32 %v69, %v221
    %223 = vmatmul.f32.gmra.mxu0 %v95
    %v224 = vpop.f32.mrf.mxu0
    %v225 = vadd.f32 %v69, %v224
    %226 = vmatmul.f32.gmra.mxu0 %v98
    %v227 = vpop.f32.mrf.mxu0
    %v228 = vadd.f32 %v69, %v227
    %229 = vmatmul.f32.gmra.mxu0 %v101
    %v230 = vpop.f32.mrf.mxu0
    %v231 = vadd.f32 %v69, %v230
    %232 = vmatmul.f32.gmra.mxu0 %v104
    %v233 = vpop.f32.mrf.mxu0
    %v234 = vadd.f32 %v69, %v233
    %235 = vmatmul.f32.gmra.mxu0 %v107
    %v236 = vpop.f32.mrf.mxu0
    %v237 = vadd.f32 %v69, %v236
    %238 = vmatmul.f32.gmra.mxu0 %v110
    %v239 = vpop.f32.mrf.mxu0
    %v240 = vadd.f32 %v69, %v239
    %241 = vmatmul.f32.gmra.mxu0 %v113
    %v242 = vpop.f32.mrf.mxu0
    %v243 = vadd.f32 %v69, %v242
    %244 = vmatmul.f32.gmra.mxu0 %v116
    %v245 = vpop.f32.mrf.mxu0
    %v246 = vadd.f32 %v69, %v245
    %247 = vmatmul.f32.gmra.mxu0 %v119
    %v248 = vpop.f32.mrf.mxu0
    %v249 = vadd.f32 %v69, %v248
    %250 = vdwg.mxu0
    %v251 = vmax.f32 %v139, 0.0
    %v252 = vmax.f32 %v204, 0.0
    %v253 = vmax.f32 %v142, 0.0
    %v254 = vmax.f32 %v207, 0.0
    %v255 = vmax.f32 %v145, 0.0
    %v256 = vmax.f32 %v210, 0.0
    %v257 = vmax.f32 %v148, 0.0
    %v258 = vmax.f32 %v213, 0.0
    %v259 = vmax.f32 %v151, 0.0
    %v260 = vmax.f32 %v216, 0.0
    %v261 = vmax.f32 %v154, 0.0
    %v262 = vmax.f32 %v219, 0.0
    %v263 = vmax.f32 %v157, 0.0
    %v264 = vmax.f32 %v222, 0.0
    %v265 = vmax.f32 %v160, 0.0
    %v266 = vmax.f32 %v225, 0.0
    %v267 = vmax.f32 %v163, 0.0
    %v268 = vmax.f32 %v228, 0.0
    %v269 = vmax.f32 %v166, 0.0
    %v270 = vmax.f32 %v231, 0.0
    %v271 = vmax.f32 %v169, 0.0
    %v272 = vmax.f32 %v234, 0.0
    %v273 = vmax.f32 %v172, 0.0
    %v274 = vmax.f32 %v237, 0.0
    %v275 = vmax.f32 %v175, 0.0
    %v276 = vmax.f32 %v240, 0.0
    %v277 = vmax.f32 %v178, 0.0
    %v278 = vmax.f32 %v243, 0.0
    %v279 = vmax.f32 %v181, 0.0
    %v280 = vmax.f32 %v246, 0.0
    %v281 = vmax.f32 %v184, 0.0
    %v282 = vmax.f32 %v249, 0.0
    %v283 = vld [vmem:[#allocation3] sm:$0xff]
    %v284 = vld [vmem:[#allocation3 + $0x8] sm:$0xff]
    %v285 = vld [vmem:[#allocation3 + $0x10] sm:$0xff]
    %v286 = vld [vmem:[#allocation3 + $0x18] sm:$0xff]
    %v287 = vld [vmem:[#allocation3 + $0x20] sm:$0xff]
    %v288 = vld [vmem:[#allocation3 + $0x28] sm:$0xff]
    %v289 = vld [vmem:[#allocation3 + $0x30] sm:$0xff]
    %v290 = vld [vmem:[#allocation3 + $0x38] sm:$0xff]
    %v291 = vld [vmem:[#allocation3 + $0x40] sm:$0xff]
    %v292 = vld [vmem:[#allocation3 + $0x48] sm:$0xff]
    %v293 = vld [vmem:[#allocation3 + $0x50] sm:$0xff]
    %v294 = vld [vmem:[#allocation3 + $0x58] sm:$0xff]
    %v295 = vld [vmem:[#allocation3 + $0x60] sm:$0xff]
    %v296 = vld [vmem:[#allocation3 + $0x68] sm:$0xff]
    %v297 = vld [vmem:[#allocation3 + $0x70] sm:$0xff]
    %v298 = vld [vmem:[#allocation3 + $0x78] sm:$0xff]
    %v299 = vld [vmem:[#allocation3 + $0x80] sm:$0xff]
    %v300 = vld [vmem:[#allocation3 + $0x88] sm:$0xff]
    %v301 = vld [vmem:[#allocation3 + $0x90] sm:$0xff]
    %v302 = vld [vmem:[#allocation3 + $0x98] sm:$0xff]
    %v303 = vld [vmem:[#allocation3 + $0xa0] sm:$0xff]
    %v304 = vld [vmem:[#allocation3 + $0xa8] sm:$0xff]
    %v305 = vld [vmem:[#allocation3 + $0xb0] sm:$0xff]
    %v306 = vld [vmem:[#allocation3 + $0xb8] sm:$0xff]
    %v307 = vld [vmem:[#allocation3 + $0xc0] sm:$0xff]
    %v308 = vld [vmem:[#allocation3 + $0xc8] sm:$0xff]
    %v309 = vld [vmem:[#allocation3 + $0xd0] sm:$0xff]
    %v310 = vld [vmem:[#allocation3 + $0xd8] sm:$0xff]
    %v311 = vld [vmem:[#allocation3 + $0xe0] sm:$0xff]
    %v312 = vld [vmem:[#allocation3 + $0xe8] sm:$0xff]
    %v313 = vld [vmem:[#allocation3 + $0xf0] sm:$0xff]
    %v314 = vld [vmem:[#allocation3 + $0xf8] sm:$0xff]
    %v315 = vld [vmem:[#allocation3 + $0x100] sm:$0xff]
    %v316 = vld [vmem:[#allocation3 + $0x108] sm:$0xff]
    %v317 = vld [vmem:[#allocation3 + $0x110] sm:$0xff]
    %v318 = vld [vmem:[#allocation3 + $0x118] sm:$0xff]
    %v319 = vld [vmem:[#allocation3 + $0x120] sm:$0xff]
    %v320 = vld [vmem:[#allocation3 + $0x128] sm:$0xff]
    %v321 = vld [vmem:[#allocation3 + $0x130] sm:$0xff]
    %v322 = vld [vmem:[#allocation3 + $0x138] sm:$0xff]
    %v323 = vld [vmem:[#allocation3 + $0x140] sm:$0xff]
    %v324 = vld [vmem:[#allocation3 + $0x148] sm:$0xff]
    %v325 = vld [vmem:[#allocation3 + $0x150] sm:$0xff]
    %v326 = vld [vmem:[#allocation3 + $0x158] sm:$0xff]
    %v327 = vld [vmem:[#allocation3 + $0x160] sm:$0xff]
    %v328 = vld [vmem:[#allocation3 + $0x168] sm:$0xff]
    %v329 = vld [vmem:[#allocation3 + $0x170] sm:$0xff]
    %v330 = vld [vmem:[#allocation3 + $0x178] sm:$0xff]
    %v331 = vld [vmem:[#allocation3 + $0x180] sm:$0xff]
    %v332 = vld [vmem:[#allocation3 + $0x188] sm:$0xff]
    %v333 = vld [vmem:[#allocation3 + $0x190] sm:$0xff]
    %v334 = vld [vmem:[#allocation3 + $0x198] sm:$0xff]
    %v335 = vld [vmem:[#allocation3 + $0x1a0] sm:$0xff]
    %v336 = vld [vmem:[#allocation3 + $0x1a8] sm:$0xff]
    %v337 = vld [vmem:[#allocation3 + $0x1b0] sm:$0xff]
    %v338 = vld [vmem:[#allocation3 + $0x1b8] sm:$0xff]
    %v339 = vld [vmem:[#allocation3 + $0x1c0] sm:$0xff]
    %v340 = vld [vmem:[#allocation3 + $0x1c8] sm:$0xff]
    %v341 = vld [vmem:[#allocation3 + $0x1d0] sm:$0xff]
    %v342 = vld [vmem:[#allocation3 + $0x1d8] sm:$0xff]
    %v343 = vld [vmem:[#allocation3 + $0x1e0] sm:$0xff]
    %v344 = vld [vmem:[#allocation3 + $0x1e8] sm:$0xff]
    %v345 = vld [vmem:[#allocation3 + $0x1f0] sm:$0xff]
    %v346 = vld [vmem:[#allocation3 + $0x1f8] sm:$0xff]
    %v347 = vld [vmem:[%s4] sm:$0x3]
    %v349 = vperm.slane %v347, 0
    %v350 = vperm.slane %v347, 1
    %353 = vmatpush.msra.mxu0 %v313
    %354 = vmatpush.msra.mxu0 %v311
    %355 = vmatpush.msra.mxu0 %v309
    %356 = vmatpush.msra.mxu0 %v307
    %357 = vmatpush.msra.mxu0 %v305
    %358 = vmatpush.msra.mxu0 %v303
    %359 = vmatpush.msra.mxu0 %v301
    %360 = vmatpush.msra.mxu0 %v299
    %361 = vmatpush.msra.mxu0 %v297
    %362 = vmatpush.msra.mxu0 %v295
    %363 = vmatpush.msra.mxu0 %v293
    %364 = vmatpush.msra.mxu0 %v291
    %365 = vmatpush.msra.mxu0 %v289
    %366 = vmatpush.msra.mxu0 %v287
    %367 = vmatpush.msra.mxu0 %v285
    %368 = vmatpush.msra.mxu0 %v283
    %369 = vmatmul.f32.gmra.mxu0 %v251
    %v370 = vpop.f32.mrf.mxu0
    %v371 = vadd.f32 %v349, %v370
    %372 = vmatmul.f32.gmra.mxu0 %v253
    %v373 = vpop.f32.mrf.mxu0
    %v374 = vadd.f32 %v349, %v373
    %375 = vmatmul.f32.gmra.mxu0 %v255
    %v376 = vpop.f32.mrf.mxu0
    %v377 = vadd.f32 %v349, %v376
    %378 = vmatmul.f32.gmra.mxu0 %v257
    %v379 = vpop.f32.mrf.mxu0
    %v380 = vadd.f32 %v349, %v379
    %381 = vmatmul.f32.gmra.mxu0 %v259
    %v382 = vpop.f32.mrf.mxu0
    %v383 = vadd.f32 %v349, %v382
    %384 = vmatmul.f32.gmra.mxu0 %v261
    %v385 = vpop.f32.mrf.mxu0
    %v386 = vadd.f32 %v349, %v385
    %387 = vmatmul.f32.gmra.mxu0 %v263
    %v388 = vpop.f32.mrf.mxu0
    %v389 = vadd.f32 %v349, %v388
    %390 = vmatmul.f32.gmra.mxu0 %v265
    %v391 = vpop.f32.mrf.mxu0
    %v392 = vadd.f32 %v349, %v391
    %393 = vmatmul.f32.gmra.mxu0 %v267
    %v394 = vpop.f32.mrf.mxu0
    %v395 = vadd.f32 %v349, %v394
    %396 = vmatmul.f32.gmra.mxu0 %v269
    %v397 = vpop.f32.mrf.mxu0
    %v398 = vadd.f32 %v349, %v397
    %399 = vmatmul.f32.gmra.mxu0 %v271
    %v400 = vpop.f32.mrf.mxu0
    %v401 = vadd.f32 %v349, %v400
    %402 = vmatmul.f32.gmra.mxu0 %v273
    %v403 = vpop.f32.mrf.mxu0
    %v404 = vadd.f32 %v349, %v403
    %405 = vmatmul.f32.gmra.mxu0 %v275
    %v406 = vpop.f32.mrf.mxu0
    %v407 = vadd.f32 %v349, %v406
    %408 = vmatmul.f32.gmra.mxu0 %v277
    %v409 = vpop.f32.mrf.mxu0
    %v410 = vadd.f32 %v349, %v409
    %411 = vmatmul.f32.gmra.mxu0 %v279
    %v412 = vpop.f32.mrf.mxu0
    %v413 = vadd.f32 %v349, %v412
    %414 = vmatmul.f32.gmra.mxu0 %v281
    %v415 = vpop.f32.mrf.mxu0
    %v416 = vadd.f32 %v349, %v415
    %417 = vdwg.mxu0
    %418 = vmatpush.msra.mxu0 %v345
    %419 = vmatpush.msra.mxu0 %v343
    %420 = vmatpush.msra.mxu0 %v341
    %421 = vmatpush.msra.mxu0 %v339
    %422 = vmatpush.msra.mxu0 %v337
    %423 = vmatpush.msra.mxu0 %v335
    %424 = vmatpush.msra.mxu0 %v333
    %425 = vmatpush.msra.mxu0 %v331
    %426 = vmatpush.msra.mxu0 %v329
    %427 = vmatpush.msra.mxu0 %v327
    %428 = vmatpush.msra.mxu0 %v325
    %429 = vmatpush.msra.mxu0 %v323
    %430 = vmatpush.msra.mxu0 %v321
    %431 = vmatpush.msra.mxu0 %v319
    %432 = vmatpush.msra.mxu0 %v317
    %433 = vmatpush.msra.mxu0 %v315
    %434 = vmatmul.f32.gmra.mxu0 %v252
    %v435 = vpop.f32.mrf.mxu0
    %v436 = vadd.f32 %v371, %v435
    %437 = vmatmul.f32.gmra.mxu0 %v254
    %v438 = vpop.f32.mrf.mxu0
    %v439 = vadd.f32 %v374, %v438
    %440 = vmatmul.f32.gmra.mxu0 %v256
    %v441 = vpop.f32.mrf.mxu0
    %v442 = vadd.f32 %v377, %v441
    %443 = vmatmul.f32.gmra.mxu0 %v258
    %v444 = vpop.f32.mrf.mxu0
    %v445 = vadd.f32 %v380, %v444
    %446 = vmatmul.f32.gmra.mxu0 %v260
    %v447 = vpop.f32.mrf.mxu0
    %v448 = vadd.f32 %v383, %v447
    %449 = vmatmul.f32.gmra.mxu0 %v262
    %v450 = vpop.f32.mrf.mxu0
    %v451 = vadd.f32 %v386, %v450
    %452 = vmatmul.f32.gmra.mxu0 %v264
    %v453 = vpop.f32.mrf.mxu0
    %v454 = vadd.f32 %v389, %v453
    %455 = vmatmul.f32.gmra.mxu0 %v266
    %v456 = vpop.f32.mrf.mxu0
    %v457 = vadd.f32 %v392, %v456
    %458 = vmatmul.f32.gmra.mxu0 %v268
    %v459 = vpop.f32.mrf.mxu0
    %v460 = vadd.f32 %v395, %v459
    %461 = vmatmul.f32.gmra.mxu0 %v270
    %v462 = vpop.f32.mrf.mxu0
    %v463 = vadd.f32 %v398, %v462
    %464 = vmatmul.f32.gmra.mxu0 %v272
    %v465 = vpop.f32.mrf.mxu0
    %v466 = vadd.f32 %v401, %v465
    %467 = vmatmul.f32.gmra.mxu0 %v274
    %v468 = vpop.f32.mrf.mxu0
    %v469 = vadd.f32 %v404, %v468
    %470 = vmatmul.f32.gmra.mxu0 %v276
    %v471 = vpop.f32.mrf.mxu0
    %v472 = vadd.f32 %v407, %v471
    %473 = vmatmul.f32.gmra.mxu0 %v278
    %v474 = vpop.f32.mrf.mxu0
    %v475 = vadd.f32 %v410, %v474
    %476 = vmatmul.f32.gmra.mxu0 %v280
    %v477 = vpop.f32.mrf.mxu0
    %v478 = vadd.f32 %v413, %v477
    %479 = vmatmul.f32.gmra.mxu0 %v282
    %v480 = vpop.f32.mrf.mxu0
    %v481 = vadd.f32 %v416, %v480
    %482 = vdwg.mxu0
    %483 = vmatpush.msra.mxu0 %v314
    %484 = vmatpush.msra.mxu0 %v312
    %485 = vmatpush.msra.mxu0 %v310
    %486 = vmatpush.msra.mxu0 %v308
    %487 = vmatpush.msra.mxu0 %v306
    %488 = vmatpush.msra.mxu0 %v304
    %489 = vmatpush.msra.mxu0 %v302
    %490 = vmatpush.msra.mxu0 %v300
    %491 = vmatpush.msra.mxu0 %v298
    %492 = vmatpush.msra.mxu0 %v296
    %493 = vmatpush.msra.mxu0 %v294
    %494 = vmatpush.msra.mxu0 %v292
    %495 = vmatpush.msra.mxu0 %v290
    %496 = vmatpush.msra.mxu0 %v288
    %497 = vmatpush.msra.mxu0 %v286
    %498 = vmatpush.msra.mxu0 %v284
    %499 = vmatmul.f32.gmra.mxu0 %v251
    %v500 = vpop.f32.mrf.mxu0
    %v501 = vadd.f32 %v350, %v500
    %502 = vmatmul.f32.gmra.mxu0 %v253
    %v503 = vpop.f32.mrf.mxu0
    %v504 = vadd.f32 %v350, %v503
    %505 = vmatmul.f32.gmra.mxu0 %v255
    %v506 = vpop.f32.mrf.mxu0
    %v507 = vadd.f32 %v350, %v506
    %508 = vmatmul.f32.gmra.mxu0 %v257
    %v509 = vpop.f32.mrf.mxu0
    %v510 = vadd.f32 %v350, %v509
    %511 = vmatmul.f32.gmra.mxu0 %v259
    %v512 = vpop.f32.mrf.mxu0
    %v513 = vadd.f32 %v350, %v512
    %514 = vmatmul.f32.gmra.mxu0 %v261
    %v515 = vpop.f32.mrf.mxu0
    %v516 = vadd.f32 %v350, %v515
    %517 = vmatmul.f32.gmra.mxu0 %v263
    %v518 = vpop.f32.mrf.mxu0
    %v519 = vadd.f32 %v350, %v518
    %520 = vmatmul.f32.gmra.mxu0 %v265
    %v521 = vpop.f32.mrf.mxu0
    %v522 = vadd.f32 %v350, %v521
    %523 = vmatmul.f32.gmra.mxu0 %v267
    %v524 = vpop.f32.mrf.mxu0
    %v525 = vadd.f32 %v350, %v524
    %526 = vmatmul.f32.gmra.mxu0 %v269
    %v527 = vpop.f32.mrf.mxu0
    %v528 = vadd.f32 %v350, %v527
    %529 = vmatmul.f32.gmra.mxu0 %v271
    %v530 = vpop.f32.mrf.mxu0
    %v531 = vadd.f32 %v350, %v530
    %532 = vmatmul.f32.gmra.mxu0 %v273
    %v533 = vpop.f32.mrf.mxu0
    %v534 = vadd.f32 %v350, %v533
    %535 = vmatmul.f32.gmra.mxu0 %v275
    %v536 = vpop.f32.mrf.mxu0
    %v537 = vadd.f32 %v350, %v536
    %538 = vmatmul.f32.gmra.mxu0 %v277
    %v539 = vpop.f32.mrf.mxu0
    %v540 = vadd.f32 %v350, %v539
    %541 = vmatmul.f32.gmra.mxu0 %v279
    %v542 = vpop.f32.mrf.mxu0
    %v543 = vadd.f32 %v350, %v542
    %544 = vmatmul.f32.gmra.mxu0 %v281
    %v545 = vpop.f32.mrf.mxu0
    %v546 = vadd.f32 %v350, %v545
    %547 = vdwg.mxu0
    %548 = vmatpush.msra.mxu0 %v346
    %549 = vmatpush.msra.mxu0 %v344
    %550 = vmatpush.msra.mxu0 %v342
    %551 = vmatpush.msra.mxu0 %v340
    %552 = vmatpush.msra.mxu0 %v338
    %553 = vmatpush.msra.mxu0 %v336
    %554 = vmatpush.msra.mxu0 %v334
    %555 = vmatpush.msra.mxu0 %v332
    %556 = vmatpush.msra.mxu0 %v330
    %557 = vmatpush.msra.mxu0 %v328
    %558 = vmatpush.msra.mxu0 %v326
    %559 = vmatpush.msra.mxu0 %v324
    %560 = vmatpush.msra.mxu0 %v322
    %561 = vmatpush.msra.mxu0 %v320
    %562 = vmatpush.msra.mxu0 %v318
    %563 = vmatpush.msra.mxu0 %v316
    %564 = vmatmul.f32.gmra.mxu0 %v252
    %v565 = vpop.f32.mrf.mxu0
    %v566 = vadd.f32 %v501, %v565
    %567 = vmatmul.f32.gmra.mxu0 %v254
    %v568 = vpop.f32.mrf.mxu0
    %v569 = vadd.f32 %v504, %v568
    %570 = vmatmul.f32.gmra.mxu0 %v256
    %v571 = vpop.f32.mrf.mxu0
    %v572 = vadd.f32 %v507, %v571
    %573 = vmatmul.f32.gmra.mxu0 %v258
    %v574 = vpop.f32.mrf.mxu0
    %v575 = vadd.f32 %v510, %v574
    %576 = vmatmul.f32.gmra.mxu0 %v260
    %v577 = vpop.f32.mrf.mxu0
    %v578 = vadd.f32 %v513, %v577
    %579 = vmatmul.f32.gmra.mxu0 %v262
    %v580 = vpop.f32.mrf.mxu0
    %v581 = vadd.f32 %v516, %v580
    %582 = vmatmul.f32.gmra.mxu0 %v264
    %v583 = vpop.f32.mrf.mxu0
    %v584 = vadd.f32 %v519, %v583
    %585 = vmatmul.f32.gmra.mxu0 %v266
    %v586 = vpop.f32.mrf.mxu0
    %v587 = vadd.f32 %v522, %v586
    %588 = vmatmul.f32.gmra.mxu0 %v268
    %v589 = vpop.f32.mrf.mxu0
    %v590 = vadd.f32 %v525, %v589
    %591 = vmatmul.f32.gmra.mxu0 %v270
    %v592 = vpop.f32.mrf.mxu0
    %v593 = vadd.f32 %v528, %v592
    %594 = vmatmul.f32.gmra.mxu0 %v272
    %v595 = vpop.f32.mrf.mxu0
    %v596 = vadd.f32 %v531, %v595
    %597 = vmatmul.f32.gmra.mxu0 %v274
    %v598 = vpop.f32.mrf.mxu0
    %v599 = vadd.f32 %v534, %v598
    %600 = vmatmul.f32.gmra.mxu0 %v276
    %v601 = vpop.f32.mrf.mxu0
    %v602 = vadd.f32 %v537, %v601
    %603 = vmatmul.f32.gmra.mxu0 %v278
    %v604 = vpop.f32.mrf.mxu0
    %v605 = vadd.f32 %v540, %v604
    %606 = vmatmul.f32.gmra.mxu0 %v280
    %v607 = vpop.f32.mrf.mxu0
    %v608 = vadd.f32 %v543, %v607
    %609 = vmatmul.f32.gmra.mxu0 %v282
    %v610 = vpop.f32.mrf.mxu0
    %v611 = vadd.f32 %v546, %v610
    %612 = vdwg.mxu0
    %v613 = vmax.f32 %v436, 0.0
    %v614 = vmax.f32 %v566, 0.0
    %v615 = vmax.f32 %v439, 0.0
    %v616 = vmax.f32 %v569, 0.0
    %v617 = vmax.f32 %v442, 0.0
    %v618 = vmax.f32 %v572, 0.0
    %v619 = vmax.f32 %v445, 0.0
    %v620 = vmax.f32 %v575, 0.0
    %v621 = vmax.f32 %v448, 0.0
    %v622 = vmax.f32 %v578, 0.0
    %v623 = vmax.f32 %v451, 0.0
    %v624 = vmax.f32 %v581, 0.0
    %v625 = vmax.f32 %v454, 0.0
    %v626 = vmax.f32 %v584, 0.0
    %v627 = vmax.f32 %v457, 0.0
    %v628 = vmax.f32 %v587, 0.0
    %v629 = vmax.f32 %v460, 0.0
    %v630 = vmax.f32 %v590, 0.0
    %v631 = vmax.f32 %v463, 0.0
    %v632 = vmax.f32 %v593, 0.0
    %v633 = vmax.f32 %v466, 0.0
    %v634 = vmax.f32 %v596, 0.0
    %v635 = vmax.f32 %v469, 0.0
    %v636 = vmax.f32 %v599, 0.0
    %v637 = vmax.f32 %v472, 0.0
    %v638 = vmax.f32 %v602, 0.0
    %v639 = vmax.f32 %v475, 0.0
    %v640 = vmax.f32 %v605, 0.0
    %v641 = vmax.f32 %v478, 0.0
    %v642 = vmax.f32 %v608, 0.0
    %v643 = vmax.f32 %v481, 0.0
    %v644 = vmax.f32 %v611, 0.0
    %v645 = vld [vmem:[%s5] sm:$0xff]
    %v646 = vld [vmem:[%s5 + $0x8] sm:$0xff]
    %v647 = vld [vmem:[%s5 + $0x10] sm:$0xff]
    %v648 = vld [vmem:[%s5 + $0x18] sm:$0xff]
    %v649 = vld [vmem:[%s5 + $0x20] sm:$0xff]
    %v650 = vld [vmem:[%s5 + $0x28] sm:$0xff]
    %v651 = vld [vmem:[%s5 + $0x30] sm:$0xff]
    %v652 = vld [vmem:[%s5 + $0x38] sm:$0xff]
    %v653 = vld [vmem:[%s5 + $0x40] sm:$0xff]
    %v654 = vld [vmem:[%s5 + $0x48] sm:$0xff]
    %v655 = vld [vmem:[%s5 + $0x50] sm:$0xff]
    %v656 = vld [vmem:[%s5 + $0x58] sm:$0xff]
    %v657 = vld [vmem:[%s5 + $0x60] sm:$0xff]
    %v658 = vld [vmem:[%s5 + $0x68] sm:$0xff]
    %v659 = vld [vmem:[%s5 + $0x70] sm:$0xff]
    %v660 = vld [vmem:[%s5 + $0x78] sm:$0xff]
    %v661 = vld [vmem:[%s5 + $0x80] sm:$0xff]
    %v662 = vld [vmem:[%s5 + $0x88] sm:$0xff]
    %v663 = vld [vmem:[%s5 + $0x90] sm:$0xff]
    %v664 = vld [vmem:[%s5 + $0x98] sm:$0xff]
    %v665 = vld [vmem:[%s5 + $0xa0] sm:$0xff]
    %v666 = vld [vmem:[%s5 + $0xa8] sm:$0xff]
    %v667 = vld [vmem:[%s5 + $0xb0] sm:$0xff]
    %v668 = vld [vmem:[%s5 + $0xb8] sm:$0xff]
    %v669 = vld [vmem:[%s5 + $0xc0] sm:$0xff]
    %v670 = vld [vmem:[%s5 + $0xc8] sm:$0xff]
    %v671 = vld [vmem:[%s5 + $0xd0] sm:$0xff]
    %v672 = vld [vmem:[%s5 + $0xd8] sm:$0xff]
    %v673 = vld [vmem:[%s5 + $0xe0] sm:$0xff]
    %v674 = vld [vmem:[%s5 + $0xe8] sm:$0xff]
    %v675 = vld [vmem:[%s5 + $0xf0] sm:$0xff]
    %v676 = vld [vmem:[%s5 + $0xf8] sm:$0xff]
    %v677 = vld [vmem:[#allocation2] sm:$0x1]
    %v679 = vperm.slane %v677, 0
    %681 = vmatpush.msra.mxu0 %v660
    %682 = vmatpush.msra.mxu0 %v659
    %683 = vmatpush.msra.mxu0 %v658
    %684 = vmatpush.msra.mxu0 %v657
    %685 = vmatpush.msra.mxu0 %v656
    %686 = vmatpush.msra.mxu0 %v655
    %687 = vmatpush.msra.mxu0 %v654
    %688 = vmatpush.msra.mxu0 %v653
    %689 = vmatpush.msra.mxu0 %v652
    %690 = vmatpush.msra.mxu0 %v651
    %691 = vmatpush.msra.mxu0 %v650
    %692 = vmatpush.msra.mxu0 %v649
    %693 = vmatpush.msra.mxu0 %v648
    %694 = vmatpush.msra.mxu0 %v647
    %695 = vmatpush.msra.mxu0 %v646
    %696 = vmatpush.msra.mxu0 %v645
    %697 = vmatmul.f32.gmra.mxu0 %v613
    %v698 = vpop.f32.mrf.mxu0
    %v699 = vadd.f32 %v679, %v698
    %700 = vmatmul.f32.gmra.mxu0 %v615
    %v701 = vpop.f32.mrf.mxu0
    %v702 = vadd.f32 %v679, %v701
    %703 = vmatmul.f32.gmra.mxu0 %v617
    %v704 = vpop.f32.mrf.mxu0
    %v705 = vadd.f32 %v679, %v704
    %706 = vmatmul.f32.gmra.mxu0 %v619
    %v707 = vpop.f32.mrf.mxu0
    %v708 = vadd.f32 %v679, %v707
    %709 = vmatmul.f32.gmra.mxu0 %v621
    %v710 = vpop.f32.mrf.mxu0
    %v711 = vadd.f32 %v679, %v710
    %712 = vmatmul.f32.gmra.mxu0 %v623
    %v713 = vpop.f32.mrf.mxu0
    %v714 = vadd.f32 %v679, %v713
    %715 = vmatmul.f32.gmra.mxu0 %v625
    %v716 = vpop.f32.mrf.mxu0
    %v717 = vadd.f32 %v679, %v716
    %718 = vmatmul.f32.gmra.mxu0 %v627
    %v719 = vpop.f32.mrf.mxu0
    %v720 = vadd.f32 %v679, %v719
    %721 = vmatmul.f32.gmra.mxu0 %v629
    %v722 = vpop.f32.mrf.mxu0
    %v723 = vadd.f32 %v679, %v722
    %724 = vmatmul.f32.gmra.mxu0 %v631
    %v725 = vpop.f32.mrf.mxu0
    %v726 = vadd.f32 %v679, %v725
    %727 = vmatmul.f32.gmra.mxu0 %v633
    %v728 = vpop.f32.mrf.mxu0
    %v729 = vadd.f32 %v679, %v728
    %730 = vmatmul.f32.gmra.mxu0 %v635
    %v731 = vpop.f32.mrf.mxu0
    %v732 = vadd.f32 %v679, %v731
    %733 = vmatmul.f32.gmra.mxu0 %v637
    %v734 = vpop.f32.mrf.mxu0
    %v735 = vadd.f32 %v679, %v734
    %736 = vmatmul.f32.gmra.mxu0 %v639
    %v737 = vpop.f32.mrf.mxu0
    %v738 = vadd.f32 %v679, %v737
    %739 = vmatmul.f32.gmra.mxu0 %v641
    %v740 = vpop.f32.mrf.mxu0
    %v741 = vadd.f32 %v679, %v740
    %742 = vmatmul.f32.gmra.mxu0 %v643
    %v743 = vpop.f32.mrf.mxu0
    %v744 = vadd.f32 %v679, %v743
    %745 = vdwg.mxu0
    %746 = vmatpush.msra.mxu0 %v676
    %747 = vmatpush.msra.mxu0 %v675
    %748 = vmatpush.msra.mxu0 %v674
    %749 = vmatpush.msra.mxu0 %v673
    %750 = vmatpush.msra.mxu0 %v672
    %751 = vmatpush.msra.mxu0 %v671
    %752 = vmatpush.msra.mxu0 %v670
    %753 = vmatpush.msra.mxu0 %v669
    %754 = vmatpush.msra.mxu0 %v668
    %755 = vmatpush.msra.mxu0 %v667
    %756 = vmatpush.msra.mxu0 %v666
    %757 = vmatpush.msra.mxu0 %v665
    %758 = vmatpush.msra.mxu0 %v664
    %759 = vmatpush.msra.mxu0 %v663
    %760 = vmatpush.msra.mxu0 %v662
    %761 = vmatpush.msra.mxu0 %v661
    %762 = vmatmul.f32.gmra.mxu0 %v614
    %v763 = vpop.f32.mrf.mxu0
    %v764 = vadd.f32 %v699, %v763
    %765 = vmatmul.f32.gmra.mxu0 %v616
    %v766 = vpop.f32.mrf.mxu0
    %v767 = vadd.f32 %v702, %v766
    %768 = vmatmul.f32.gmra.mxu0 %v618
    %v769 = vpop.f32.mrf.mxu0
    %v770 = vadd.f32 %v705, %v769
    %771 = vmatmul.f32.gmra.mxu0 %v620
    %v772 = vpop.f32.mrf.mxu0
    %v773 = vadd.f32 %v708, %v772
    %774 = vmatmul.f32.gmra.mxu0 %v622
    %v775 = vpop.f32.mrf.mxu0
    %v776 = vadd.f32 %v711, %v775
    %777 = vmatmul.f32.gmra.mxu0 %v624
    %v778 = vpop.f32.mrf.mxu0
    %v779 = vadd.f32 %v714, %v778
    %780 = vmatmul.f32.gmra.mxu0 %v626
    %v781 = vpop.f32.mrf.mxu0
    %v782 = vadd.f32 %v717, %v781
    %783 = vmatmul.f32.gmra.mxu0 %v628
    %v784 = vpop.f32.mrf.mxu0
    %v785 = vadd.f32 %v720, %v784
    %786 = vmatmul.f32.gmra.mxu0 %v630
    %v787 = vpop.f32.mrf.mxu0
    %v788 = vadd.f32 %v723, %v787
    %789 = vmatmul.f32.gmra.mxu0 %v632
    %v790 = vpop.f32.mrf.mxu0
    %v791 = vadd.f32 %v726, %v790
    %792 = vmatmul.f32.gmra.mxu0 %v634
    %v793 = vpop.f32.mrf.mxu0
    %v794 = vadd.f32 %v729, %v793
    %795 = vmatmul.f32.gmra.mxu0 %v636
    %v796 = vpop.f32.mrf.mxu0
    %v797 = vadd.f32 %v732, %v796
    %798 = vmatmul.f32.gmra.mxu0 %v638
    %v799 = vpop.f32.mrf.mxu0
    %v800 = vadd.f32 %v735, %v799
    %801 = vmatmul.f32.gmra.mxu0 %v640
    %v802 = vpop.f32.mrf.mxu0
    %v803 = vadd.f32 %v738, %v802
    %804 = vmatmul.f32.gmra.mxu0 %v642
    %v805 = vpop.f32.mrf.mxu0
    %v806 = vadd.f32 %v741, %v805
    %807 = vmatmul.f32.gmra.mxu0 %v644
    %v808 = vpop.f32.mrf.mxu0
    %v809 = vadd.f32 %v744, %v808
    %810 = vdwg.mxu0
    %vm811 = vcmask 7168
    %812 = vst.msk [vmem:[%s7] sm:$0xff] %vm811, %v764
    %813 = vst.msk [vmem:[%s7 + $0x8] sm:$0xff] %vm811, %v767
    %814 = vst.msk [vmem:[%s7 + $0x10] sm:$0xff] %vm811, %v770
    %815 = vst.msk [vmem:[%s7 + $0x18] sm:$0xff] %vm811, %v773
    %816 = vst.msk [vmem:[%s7 + $0x20] sm:$0xff] %vm811, %v776
    %817 = vst.msk [vmem:[%s7 + $0x28] sm:$0xff] %vm811, %v779
    %818 = vst.msk [vmem:[%s7 + $0x30] sm:$0xff] %vm811, %v782
    %819 = vst.msk [vmem:[%s7 + $0x38] sm:$0xff] %vm811, %v785
    %820 = vst.msk [vmem:[%s7 + $0x40] sm:$0xff] %vm811, %v788
    %821 = vst.msk [vmem:[%s7 + $0x48] sm:$0xff] %vm811, %v791
    %822 = vst.msk [vmem:[%s7 + $0x50] sm:$0xff] %vm811, %v794
    %823 = vst.msk [vmem:[%s7 + $0x58] sm:$0xff] %vm811, %v797
    %824 = vst.msk [vmem:[%s7 + $0x60] sm:$0xff] %vm811, %v800
    %825 = vst.msk [vmem:[%s7 + $0x68] sm:$0xff] %vm811, %v803
    %826 = vst.msk [vmem:[%s7 + $0x70] sm:$0xff] %vm811, %v806
    %827 = vst.msk [vmem:[%s7 + $0x78] sm:$0xff] %vm811, %v809
    // Predicated region
    $region34: #{tpu_custom_call.1} parent=1 // pred_check
      _
    $region35: #{tpu_custom_call.1} parent=1 // pred_check_branch
      %829 = sbr.rel (0) target = $region37
    $region36: #{tpu_custom_call.1} parent=1 // pred_region
      _
    $region37: #{tpu_custom_call.1} parent=1 // pred_fallthru
      _
    // Predicated region
    $region38: #{tpu_custom_call.1} parent=1 // pred_check
      _
    $region39: #{tpu_custom_call.1} parent=1 // pred_check_branch
      %831 = sbr.rel (0) target = $region41
    $region40: #{tpu_custom_call.1} parent=1 // pred_region
      _
    $region41: #{tpu_custom_call.1} parent=1 // pred_fallthru
      _
    %832 = vsyncpa [#allocation4], 1

</llo_original>
